<compile_context>
chip_gen: v7x
topology: tpu7x:2x2x1
jax: 0.10.0
libtpu: 0.0.40
codegen_flags: <defaults>
</compile_context>

<pallas_src>
import jax
import jax.numpy as jnp
from jax import lax
from jax.experimental import pallas as pl
from jax.experimental.pallas import tpu as pltpu

NEG_SLOPE = 0.01  # F.leaky_relu default negative_slope


def weibull_kernel(x_ref, w1t_ref, b1t_ref, w2t_ref, b2t_ref, o_ref):
    """Fused, feature-major (transposed) 2-layer MLP + exp.

    x_ref  : (tb, D)   batch tile (batch on sublanes, features on lanes)
    w1t_ref: (2H, D)   [w1_rate | w1_k] concatenated then transposed
    b1t_ref: (2H, 1)
    w2t_ref: (O, 2H)
    b2t_ref: (O, 1)    b2_rate + b2_k
    o_ref  : (O, tb)   lane-dense output row for this batch tile
    """
    x = x_ref[...]                                           # (tb, D)

    # h = W1^T @ x^T  -> (2H, tb).  Contract the feature axis of both
    # operands (rhs-transposed matmul, same pattern as q @ k.T); avoids any
    # explicit in-kernel transpose.
    h = lax.dot_general(
        w1t_ref[...], x,
        dimension_numbers=(((1,), (1,)), ((), ())),
        preferred_element_type=jnp.float32,
    )
    h = h + b1t_ref[...]                                     # lane-broadcast bias
    h = jnp.where(h > 0, h, NEG_SLOPE * h)                   # leaky_relu

    # logits = W2^T @ h + b2  -> (O, tb); exp(rate_logits + k_logits).
    logits = jnp.dot(w2t_ref[...], h,
                     preferred_element_type=jnp.float32) + b2t_ref[...]
    o_ref[...] = jnp.exp(logits).astype(o_ref.dtype)


def weibull_forward(x, packed_params, *, tb=512):
    """x: [B, D] float32; packed_params: (w1t, b1t, w2t, b2t) from pack_params.

    Returns [B, O] matching the PyTorch forward.
    """
    w1t, b1t, w2t, b2t = packed_params
    B, D = x.shape
    O = w2t.shape[0]

    # Batch-tile selection: single tile if B fits, otherwise a multiple of 128
    # so the lane-dense (O, tb) output block stays 128-aligned across tiles.
    if B <= tb:
        tb = B
    else:
        tb = max(128, (tb // 128) * 128)
    num_tiles = pl.cdiv(B, tb)
    bp = num_tiles * tb                                      # padded batch extent

    full = lambda shape: pl.BlockSpec(shape, lambda i: (0, 0))  # VMEM-resident

    out = pl.pallas_call(
        weibull_kernel,
        out_shape=jax.ShapeDtypeStruct((O, bp), x.dtype),
        grid_spec=pltpu.PrefetchScalarGridSpec(
            num_scalar_prefetch=0,
            grid=(num_tiles,),                               # tile over batch only
            in_specs=[
                # x batch tile.  On v5e (slower HBM), if the per-step DMA is
                # exposed, switch to:
                # pl.BlockSpec((tb, D), lambda i: (i, 0),
                #              pipeline_mode=pl.Buffered(3))
                pl.BlockSpec((tb, D), lambda i: (i, 0)),
                full(w1t.shape),                             # (2H, D)
                full(b1t.shape),                             # (2H, 1)
                full(w2t.shape),                             # (O, 2H)
                full(b2t.shape),                             # (O, 1)
            ],
            out_specs=pl.BlockSpec((O, tb), lambda i: (0, i)),
        ),
        compiler_params=pltpu.CompilerParams(
            dimension_semantics=("parallel",)),
    )(x, w1t, b1t, w2t, b2t)

    # Drop padded batch columns (OOB rows may have produced inf/NaN — never
    # reduced over) and return in the PyTorch [B, O] orientation.
    return out[:, :B].T


def init_params(key, input_dim, hidden_dim, output_dim, dtype=jnp.float32):
    """PyTorch-nn.Linear-style init (uniform +/- 1/sqrt(fan_in)); weights are
    stored [in, out] per branch (unfused) — used by the pure-JAX reference."""
    def linear(k, fan_in, fan_out):
        kw, kb = jax.random.split(k)
        bound = 1.0 / jnp.sqrt(fan_in)
        w = jax.random.uniform(kw, (fan_in, fan_out), dtype, -bound, bound)
        b = jax.random.uniform(kb, (1, fan_out), dtype, -bound, bound)
        return w, b

    k1, k2, k3, k4 = jax.random.split(key, 4)
    w1r, b1r = linear(k1, input_dim, hidden_dim)
    w2r, b2r = linear(k2, hidden_dim, output_dim)
    w1k, b1k = linear(k3, input_dim, hidden_dim)
    w2k, b2k = linear(k4, hidden_dim, output_dim)
    return (w1r, b1r, w2r, b2r, w1k, b1k, w2k, b2k)


def pack_params(params):
    """Fuse rate/k branches and transpose into the kernel's feature-major layout."""
    w1r, b1r, w2r, b2r, w1k, b1k, w2k, b2k = params
    w1t = jnp.concatenate([w1r, w1k], axis=1).T   # (2H, D)
    b1t = jnp.concatenate([b1r, b1k], axis=1).T   # (2H, 1)
    w2t = jnp.concatenate([w2r, w2k], axis=0).T   # (O, 2H)
    b2t = (b2r + b2k).T                           # (O, 1)
    return w1t, b1t, w2t, b2t


def weibull_reference(x, params):
    """Pure-JAX reference matching the PyTorch forward (unfused branches)."""
    w1r, b1r, w2r, b2r, w1k, b1k, w2k, b2k = params

    def mlp(w1, b1, w2, b2):
        h = x @ w1 + b1
        h = jnp.where(h > 0, h, NEG_SLOPE * h)
        return h @ w2 + b2

    return jnp.exp(mlp(w1r, b1r, w2r, b2r)) * jnp.exp(mlp(w1k, b1k, w2k, b2k))


if __name__ == "__main__":
    # Module defaults: hidden_layers=[10], output_dim=1.  B=256 with tb=128
    # gives a 2-step parallel grid (exercises the batch tiling path and keeps
    # both v7x TensorCores busy) while staying small.
    B, INPUT_DIM, HIDDEN_DIM, OUTPUT_DIM = 256, 32, 10, 1

    key = jax.random.PRNGKey(0)
    kx, kp = jax.random.split(key)
    x = jax.random.normal(kx, (B, INPUT_DIM), jnp.float32)
    params = init_params(kp, INPUT_DIM, HIDDEN_DIM, OUTPUT_DIM)
    packed = pack_params(params)

    out = weibull_forward(x, packed, tb=128)
    out = jax.block_until_ready(out)

    ref = weibull_reference(x, params)
    assert out.shape == (B, OUTPUT_DIM)
    assert jnp.allclose(out, ref, rtol=1e-5, atol=1e-6), float(
        jnp.max(jnp.abs(out - ref)))

    print("KERNEL_OK")
</pallas_src>

<mosaic_0001>
module attributes {stable_mosaic.version = 11 : i64} {
  func.func @weibull_kernel(%arg0: i32, %arg1: memref<128x32xf32, #tpu.memory_space<vmem>>, %arg2: memref<20x32xf32, #tpu.memory_space<vmem>>, %arg3: memref<20x1xf32, #tpu.memory_space<vmem>>, %arg4: memref<1x20xf32, #tpu.memory_space<vmem>>, %arg5: memref<1x1xf32, #tpu.memory_space<vmem>>, %arg6: memref<1x128xf32, #tpu.memory_space<vmem>>) attributes {dimension_semantics = [#tpu.dimension_semantics<parallel>], iteration_bounds = array<i64: 2>, scalar_prefetch = 0 : i64, scratch_operands = 0 : i64, tpu.core_type = #tpu.core_type<tc>, window_params = [{transform_indices = @transform_0, window_bounds = array<i64: 128, 32>}, {pipeline_mode = #tpu.pipeline_mode<synchronous>, transform_indices = @transform_1, window_bounds = array<i64: 20, 32>}, {pipeline_mode = #tpu.pipeline_mode<synchronous>, transform_indices = @transform_2, window_bounds = array<i64: 20, 1>}, {pipeline_mode = #tpu.pipeline_mode<synchronous>, transform_indices = @transform_3, window_bounds = array<i64: 1, 20>}, {pipeline_mode = #tpu.pipeline_mode<synchronous>, transform_indices = @transform_4, window_bounds = array<i64: 1, 1>}, {transform_indices = @transform_5, window_bounds = array<i64: 1, 128>}]} {
    %c0 = arith.constant 0 : index
    %c0_0 = arith.constant 0 : index
    %0 = vector.load %arg1[%c0, %c0_0] : memref<128x32xf32, #tpu.memory_space<vmem>>, vector<128x32xf32>
    %c0_1 = arith.constant 0 : index
    %c0_2 = arith.constant 0 : index
    %1 = vector.load %arg2[%c0_1, %c0_2] : memref<20x32xf32, #tpu.memory_space<vmem>>, vector<20x32xf32>
    %cst = arith.constant dense<0.000000e+00> : vector<20x128xf32>
    %2 = tpu.matmul %1, %0, %cst {dimension_numbers = #tpu.dot_dimension_numbers<[1], [1], [0], [0], [0, 0, 1, 0], [], []>} : vector<20x32xf32>, vector<128x32xf32>, vector<20x128xf32> -> vector<20x128xf32>
    %c0_3 = arith.constant 0 : index
    %c0_4 = arith.constant 0 : index
    %3 = vector.load %arg3[%c0_3, %c0_4] : memref<20x1xf32, #tpu.memory_space<vmem>>, vector<20x1xf32>
    %4 = vector.broadcast %3 : vector<20x1xf32> to vector<20x128xf32>
    %5 = arith.addf %2, %4 : vector<20x128xf32>
    %cst_5 = arith.constant 0.000000e+00 : f32
    %6 = vector.broadcast %cst_5 : f32 to vector<20x128xf32>
    %7 = arith.cmpf ogt, %5, %6 : vector<20x128xf32>
    %cst_6 = arith.constant 0.00999999977 : f32
    %8 = vector.broadcast %cst_6 : f32 to vector<20x128xf32>
    %9 = arith.mulf %8, %5 : vector<20x128xf32>
    %10 = arith.select %7, %5, %9 : vector<20x128xi1>, vector<20x128xf32>
    %c0_7 = arith.constant 0 : index
    %c0_8 = arith.constant 0 : index
    %11 = vector.load %arg4[%c0_7, %c0_8] : memref<1x20xf32, #tpu.memory_space<vmem>>, vector<1x20xf32>
    %cst_9 = arith.constant dense<0.000000e+00> : vector<1x128xf32>
    %12 = tpu.matmul %11, %10, %cst_9 {dimension_numbers = #tpu.dot_dimension_numbers<[1], [0], [0], [1], [0, 0, 1, 1], [], []>} : vector<1x20xf32>, vector<20x128xf32>, vector<1x128xf32> -> vector<1x128xf32>
    %c0_10 = arith.constant 0 : index
    %c0_11 = arith.constant 0 : index
    %13 = vector.load %arg5[%c0_10, %c0_11] : memref<1x1xf32, #tpu.memory_space<vmem>>, vector<1x1xf32>
    %14 = vector.broadcast %13 : vector<1x1xf32> to vector<1x128xf32>
    %15 = arith.addf %12, %14 : vector<1x128xf32>
    %16 = math.exp %15 : vector<1x128xf32>
    %c0_12 = arith.constant 0 : index
    %c0_13 = arith.constant 0 : index
    %17 = vector.load %arg6[%c0_12, %c0_13] : memref<1x128xf32, #tpu.memory_space<vmem>>, vector<1x128xf32>
    tpu.vector_store %arg6[%c0_12, %c0_13], %16 {strides = array<i32>} : memref<1x128xf32, #tpu.memory_space<vmem>>, vector<1x128xf32>,
    return
  }
  func.func @transform_0(%arg0: i32) -> (i32, i32) {
    %c0_i32 = arith.constant 0 : i32
    %c0_i32_0 = arith.constant 0 : i32
    return %arg0, %c0_i32 : i32, i32
  }
  func.func @transform_1(%arg0: i32) -> (i32, i32) {
    %c0_i32 = arith.constant 0 : i32
    %c0_i32_0 = arith.constant 0 : i32
    %c0_i32_1 = arith.constant 0 : i32
    return %c0_i32, %c0_i32_0 : i32, i32
  }
  func.func @transform_2(%arg0: i32) -> (i32, i32) {
    %c0_i32 = arith.constant 0 : i32
    %c0_i32_0 = arith.constant 0 : i32
    %c0_i32_1 = arith.constant 0 : i32
    return %c0_i32, %c0_i32_0 : i32, i32
  }
  func.func @transform_3(%arg0: i32) -> (i32, i32) {
    %c0_i32 = arith.constant 0 : i32
    %c0_i32_0 = arith.constant 0 : i32
    %c0_i32_1 = arith.constant 0 : i32
    return %c0_i32, %c0_i32_0 : i32, i32
  }
  func.func @transform_4(%arg0: i32) -> (i32, i32) {
    %c0_i32 = arith.constant 0 : i32
    %c0_i32_0 = arith.constant 0 : i32
    %c0_i32_1 = arith.constant 0 : i32
    return %c0_i32, %c0_i32_0 : i32, i32
  }
  func.func @transform_5(%arg0: i32) -> (i32, i32) {
    %c0_i32 = arith.constant 0 : i32
    %c0_i32_0 = arith.constant 0 : i32
    return %c0_i32, %arg0 : i32, i32
  }
}

</mosaic_0001>

<llo_original>
// kernel: tpu_custom_call.1
$region0: #{tpu_custom_call.1}
  #allocation0 [shape = 'u32[]', space=smem, size = 0x4, offset = 0x4, fixed_abs, tag = 'smem constant byte address 0x4 - core index']
  #allocation1 [shape = 'u32[144,128]{1,0:T(1,128)}', space=vmem, size = 0x12000, scoped, tag = 'internal scratch']
  #allocation2 [shape = 'f32[1,1]{1,0:T(1,128)S(1)}', space=vmem, size = 0x200, scoped, tag = 'scoped memory for tpu_custom_call.1']
  %s0 = inlined_call_operand.vmem [shape: f32[256,32], index: 0, kind: input, shape index: {}]
  %s1 = inlined_call_operand.vmem [shape: f32[20,32], index: 1, kind: input, shape index: {}]
  %s2 = inlined_call_operand.vmem [shape: f32[20,1], index: 2, kind: input, shape index: {}]
  %s3 = inlined_call_operand.vmem [shape: f32[1,20], index: 3, kind: input, shape index: {}]
  %s4 = inlined_call_operand.<no memory space> [shape: f32[1,1], index: 4, kind: input, shape index: {}]
  %s5 = inlined_call_operand.hbm [shape: f32[1,256], index: 5, kind: output, shape index: {}]
  %s6 = sld [smem:[#allocation0]]
  $region53: #{tpu_custom_call.1} parent=0
    _
  %s8 = ssub.s32 1, %s6
  %s9 = scalar_select 0, %s8, %s6
  %v10 = vstv %s4
  %11 = vst [vmem:[#allocation2] sm:$0x1] %v10
  $region1: #{tpu_custom_call.1} parent=0
    #allocation3 [shape = 'u8[1024]{0}', space=vmem, size = 0x400, scoped, tag = 'output window, operand 0']
    #allocation4 [shape = 's32[2]{0}', space=sflag, size = 0x8, scoped, tag = 'scoped memory for tpu_custom_call.1']
    %12 = vsyncpa [#allocation4], 0
    %s13 = scalar_lea.sflag [#allocation4], 1
    %14 = vsyncpa %s13, 0
    loop: start=0, step=1, limit=4
    $region2: #{tpu_custom_call.1} parent=1 // loop_pre_header
      _
    $region3: #{tpu_custom_call.1} parent=1 // loop_header
      %s16 = sphi 0, %s20
      %p17 = scmp.ge.s32.totalorder %s16, 4
      %s26 = sphi 0, %s28
      %s29 = sphi 0, %s26
      %s30 = sphi 0, %s29
      %s46 = sphi 0, %s30
      %s50 = sphi 0, %s50
      %s52 = sphi 0, %s50
      %s53 = sphi 0, %s52
      %s67 = sphi 0, %s53
      %s71 = sphi 0, %s71
      %s73 = sphi 0, %s71
      %s74 = sphi 0, %s73
      %s88 = sphi 0, %s74
      %s92 = sphi 0, %s92
      %s94 = sphi 0, %s92
      %s95 = sphi 0, %s94
      %s109 = sphi 0, %s95
      %s113 = sphi 0, %s113
      %s115 = sphi 0, %s113
      %s116 = sphi 0, %s115
      %s130 = sphi 0, %s116
      %s136 = sphi 0, %s138
      %s139 = sphi 0, %s136
      %s140 = sphi 0, %s139
      %s156 = sphi 0, %s140
    $region4: #{tpu_custom_call.1} parent=1 // loop_header_branch
      %19 = sbr.rel (%p17) target = $region8
    $region5: #{tpu_custom_call.1} parent=1 // loop_body
      %s21 = ssub.s32 %s16, 1
      %s22 = ssub.s32 %s16, 2
      %s23 = sadd.s32 %s16, 1
      %s24 = ssub.s32 %s16, %s23
      %p25 = scmp.eq.s32.totalorder %s24, 0
      %s27 = sadd.s32 %s26, 1
      %s28 = scalar_select %p25, %s26, %s27
      %p31 = pneg %p25
      %p32 = scmp.eq.s32.totalorder %s16, 1
      %p33 = por %p31, %p32
      %p34 = scmp.ne.s32.totalorder %s26, %s29
      %p35 = scmp.eq.s32.totalorder %s16, 0
      %p36 = por %p34, %p35
      %p37 = scmp.ne.s32.totalorder %s26, %s29
      %p38 = scmp.eq.s32.totalorder %s21, 1
      %p39 = por %p37, %p38
      %p40 = scmp.ne.s32.totalorder %s29, %s30
      %p41 = scmp.eq.s32.totalorder %s21, 0
      %p42 = por %p40, %p41
      %p43 = scmp.ne.s32.totalorder %s29, %s30
      %p44 = scmp.eq.s32.totalorder %s22, 1
      %p45 = por %p43, %p44
      %p47 = scmp.ne.s32.totalorder %s30, %s46
      %p48 = scmp.eq.s32.totalorder %s22, 0
      %p49 = por %p47, %p48
      %s51 = sadd.s32 %s50, 1
      %p54 = scmp.eq.s32.totalorder %s16, 1
      %p55 = scmp.ne.s32.totalorder %s50, %s52
      %p56 = scmp.eq.s32.totalorder %s16, 0
      %p57 = por %p55, %p56
      %p58 = scmp.ne.s32.totalorder %s50, %s52
      %p59 = scmp.eq.s32.totalorder %s21, 1
      %p60 = por %p58, %p59
      %p61 = scmp.ne.s32.totalorder %s52, %s53
      %p62 = scmp.eq.s32.totalorder %s21, 0
      %p63 = por %p61, %p62
      %p64 = scmp.ne.s32.totalorder %s52, %s53
      %p65 = scmp.eq.s32.totalorder %s22, 1
      %p66 = por %p64, %p65
      %p68 = scmp.ne.s32.totalorder %s53, %s67
      %p69 = scmp.eq.s32.totalorder %s22, 0
      %p70 = por %p68, %p69
      %s72 = sadd.s32 %s71, 1
      %p75 = scmp.eq.s32.totalorder %s16, 1
      %p76 = scmp.ne.s32.totalorder %s71, %s73
      %p77 = scmp.eq.s32.totalorder %s16, 0
      %p78 = por %p76, %p77
      %p79 = scmp.ne.s32.totalorder %s71, %s73
      %p80 = scmp.eq.s32.totalorder %s21, 1
      %p81 = por %p79, %p80
      %p82 = scmp.ne.s32.totalorder %s73, %s74
      %p83 = scmp.eq.s32.totalorder %s21, 0
      %p84 = por %p82, %p83
      %p85 = scmp.ne.s32.totalorder %s73, %s74
      %p86 = scmp.eq.s32.totalorder %s22, 1
      %p87 = por %p85, %p86
      %p89 = scmp.ne.s32.totalorder %s74, %s88
      %p90 = scmp.eq.s32.totalorder %s22, 0
      %p91 = por %p89, %p90
      %s93 = sadd.s32 %s92, 1
      %p96 = scmp.eq.s32.totalorder %s16, 1
      %p97 = scmp.ne.s32.totalorder %s92, %s94
      %p98 = scmp.eq.s32.totalorder %s16, 0
      %p99 = por %p97, %p98
      %p100 = scmp.ne.s32.totalorder %s92, %s94
      %p101 = scmp.eq.s32.totalorder %s21, 1
      %p102 = por %p100, %p101
      %p103 = scmp.ne.s32.totalorder %s94, %s95
      %p104 = scmp.eq.s32.totalorder %s21, 0
      %p105 = por %p103, %p104
      %p106 = scmp.ne.s32.totalorder %s94, %s95
      %p107 = scmp.eq.s32.totalorder %s22, 1
      %p108 = por %p106, %p107
      %p110 = scmp.ne.s32.totalorder %s95, %s109
      %p111 = scmp.eq.s32.totalorder %s22, 0
      %p112 = por %p110, %p111
      %s114 = sadd.s32 %s113, 1
      %p117 = scmp.eq.s32.totalorder %s16, 1
      %p118 = scmp.ne.s32.totalorder %s113, %s115
      %p119 = scmp.eq.s32.totalorder %s16, 0
      %p120 = por %p118, %p119
      %p121 = scmp.ne.s32.totalorder %s113, %s115
      %p122 = scmp.eq.s32.totalorder %s21, 1
      %p123 = por %p121, %p122
      %p124 = scmp.ne.s32.totalorder %s115, %s116
      %p125 = scmp.eq.s32.totalorder %s21, 0
      %p126 = por %p124, %p125
      %p127 = scmp.ne.s32.totalorder %s115, %s116
      %p128 = scmp.eq.s32.totalorder %s22, 1
      %p129 = por %p127, %p128
      %p131 = scmp.ne.s32.totalorder %s116, %s130
      %p132 = scmp.eq.s32.totalorder %s22, 0
      %p133 = por %p131, %p132
      %s134 = ssub.s32 %s16, %s23
      %p135 = scmp.eq.s32.totalorder %s134, 0
      %s137 = sadd.s32 %s136, 1
      %s138 = scalar_select %p135, %s136, %s137
      %p141 = pneg %p135
      %p142 = scmp.eq.s32.totalorder %s16, 1
      %p143 = por %p141, %p142
      %p144 = scmp.ne.s32.totalorder %s136, %s139
      %p145 = scmp.eq.s32.totalorder %s16, 0
      %p146 = por %p144, %p145
      %p147 = scmp.ne.s32.totalorder %s136, %s139
      %p148 = scmp.eq.s32.totalorder %s21, 1
      %p149 = por %p147, %p148
      %p150 = scmp.ne.s32.totalorder %s139, %s140
      %p151 = scmp.eq.s32.totalorder %s21, 0
      %p152 = por %p150, %p151
      %p153 = scmp.ne.s32.totalorder %s139, %s140
      %p154 = scmp.eq.s32.totalorder %s22, 1
      %p155 = por %p153, %p154
      %p157 = scmp.ne.s32.totalorder %s140, %s156
      %p158 = scmp.eq.s32.totalorder %s22, 0
      %p159 = por %p157, %p158
      %p160 = scmp.le.s32.totalorder 1, %s16
      %p161 = scmp.lt.s32.totalorder %s16, 3
      %p162 = pnand %p160, %p161
      %p163 = pneg %p162
      // Predicated region
      $region9: #{tpu_custom_call.1} parent=5 // pred_check
        _
      $region10: #{tpu_custom_call.1} parent=5 // pred_check_branch
        %165 = sbr.rel (%p162) target = $region12
      $region11: #{tpu_custom_call.1} parent=5 // pred_region
        %s166 = ssub.s32 %s16, 1
        // Predicated region
        $region13: #{tpu_custom_call.1} parent=11 // pred_check
          %p167 = pneg %p63
        $region14: #{tpu_custom_call.1} parent=11 // pred_check_branch
          %169 = sbr.rel (%p167) target = $region16
        $region15: #{tpu_custom_call.1} parent=11 // pred_region
          _
        $region16: #{tpu_custom_call.1} parent=11 // pred_fallthru
          _
        // Predicated region
        $region17: #{tpu_custom_call.1} parent=11 // pred_check
          %p170 = pneg %p84
        $region18: #{tpu_custom_call.1} parent=11 // pred_check_branch
          %172 = sbr.rel (%p170) target = $region20
        $region19: #{tpu_custom_call.1} parent=11 // pred_region
          _
        $region20: #{tpu_custom_call.1} parent=11 // pred_fallthru
          _
        // Predicated region
        $region21: #{tpu_custom_call.1} parent=11 // pred_check
          %p173 = pneg %p105
        $region22: #{tpu_custom_call.1} parent=11 // pred_check_branch
          %175 = sbr.rel (%p173) target = $region24
        $region23: #{tpu_custom_call.1} parent=11 // pred_region
          _
        $region24: #{tpu_custom_call.1} parent=11 // pred_fallthru
          _
        // Predicated region
        $region25: #{tpu_custom_call.1} parent=11 // pred_check
          %p176 = pneg %p126
        $region26: #{tpu_custom_call.1} parent=11 // pred_check_branch
          %178 = sbr.rel (%p176) target = $region28
        $region27: #{tpu_custom_call.1} parent=11 // pred_region
          _
        $region28: #{tpu_custom_call.1} parent=11 // pred_fallthru
          _
      $region12: #{tpu_custom_call.1} parent=5 // pred_fallthru
        _
      %p179 = scmp.lt.s32.totalorder %s16, 2
      // Predicated region
      $region29: #{tpu_custom_call.1} parent=5 // pred_check
        %p180 = pneg %p179
      $region30: #{tpu_custom_call.1} parent=5 // pred_check_branch
        %182 = sbr.rel (%p180) target = $region32
      $region31: #{tpu_custom_call.1} parent=5 // pred_region
        // Predicated region
        $region33: #{tpu_custom_call.1} parent=31 // pred_check
          %p183 = pneg %p36
        $region34: #{tpu_custom_call.1} parent=31 // pred_check_branch
          %185 = sbr.rel (%p183) target = $region36
        $region35: #{tpu_custom_call.1} parent=31 // pred_region
          %s186 = smul.u32 16, %s16
          %p187 = scmp.lt.s32.totalorder %s186, 31
          %s188 = scalar_select %p187, %s186, 31
          %s189 = smul.addr %s188, 8
          %s190 = scalar_lea.vmem %s0, %s189
          %s191 = smul.u32 16, %s16
        $region36: #{tpu_custom_call.1} parent=31 // pred_fallthru
          _
      $region32: #{tpu_custom_call.1} parent=5 // pred_fallthru
        _
      %p192 = scmp.le.s32.totalorder 1, %s16
      %p193 = scmp.lt.s32.totalorder %s16, 3
      %p194 = pnand %p192, %p193
      %p195 = pneg %p194
      // Predicated region
      $region37: #{tpu_custom_call.1} parent=5 // pred_check
        _
      $region38: #{tpu_custom_call.1} parent=5 // pred_check_branch
        %197 = sbr.rel (%p194) target = $region40
      $region39: #{tpu_custom_call.1} parent=5 // pred_region
        %s198 = ssub.s32 %s16, 1
        %s199 = smul.u32 16, %s21
        %p200 = scmp.lt.s32.totalorder %s199, 31
        %s201 = scalar_select %p200, %s199, 31
        %s202 = smul.addr %s201, 8
        %s203 = scalar_lea.vmem %s0, %s202
        %p204 = pneg %p42
        %p205 = pneg %p39
        %p206 = pneg %p63
        %p207 = pneg %p60
        %p208 = pneg %p84
        %p209 = pneg %p81
        %p210 = pneg %p105
        %p211 = pneg %p102
        %p212 = pneg %p126
        %p213 = pneg %p123
        %p214 = pneg %p152
        %p215 = pneg %p149
        %s216 = sand.u32 %s139, 1
        %s217 = scalar_lea.sflag [#allocation4], %s216
        %s218 = sand.u32 %s139, 1
        %s219 = scalar_lea.vmem [#allocation3], %s218
        %s220 = smul.u32 16, %s21
        %p221 = scmp.lt.s32.totalorder %s220, 31
        %s222 = scalar_select %p221, %s220, 31
        %s223 = smul.addr %s222, 8
        %s224 = scalar_lea.vmem %s0, %s223
        %s225 = smul.u32 16, %s21
        %v226 = vld [vmem:[%s224] sm:$0xff]
        %v227 = vld [vmem:[%s224 + $0x8] sm:$0xff]
        %v228 = vld [vmem:[%s224 + $0x10] sm:$0xff]
        %v229 = vld [vmem:[%s224 + $0x18] sm:$0xff]
        %v230 = vld [vmem:[%s224 + $0x20] sm:$0xff]
        %v231 = vld [vmem:[%s224 + $0x28] sm:$0xff]
        %v232 = vld [vmem:[%s224 + $0x30] sm:$0xff]
        %v233 = vld [vmem:[%s224 + $0x38] sm:$0xff]
        %v234 = vld [vmem:[%s224 + $0x40] sm:$0xff]
        %v235 = vld [vmem:[%s224 + $0x48] sm:$0xff]
        %v236 = vld [vmem:[%s224 + $0x50] sm:$0xff]
        %v237 = vld [vmem:[%s224 + $0x58] sm:$0xff]
        %v238 = vld [vmem:[%s224 + $0x60] sm:$0xff]
        %v239 = vld [vmem:[%s224 + $0x68] sm:$0xff]
        %v240 = vld [vmem:[%s224 + $0x70] sm:$0xff]
        %v241 = vld [vmem:[%s224 + $0x78] sm:$0xff]
        %v242 = vld [vmem:[%s1] sm:$0xff]
        %v243 = vld [vmem:[%s1 + $0x8] sm:$0xff]
        %v244 = vld [vmem:[%s1 + $0x10] sm:$0xf]
        %v245 = vld [vmem:[%s2] sm:$0xff]
        %v246 = vld [vmem:[%s2 + $0x8] sm:$0xff]
        %v247 = vld [vmem:[%s2 + $0x10] sm:$0xf]
        %249 = vset.pattern.permute.xlu0 0
        %250 = vperm.xlu0 %249, %v245
        %v251 = vpop.permute.xlu0 %250
        %254 = vset.pattern.permute.xlu0 0
        %255 = vperm.xlu0 %254, %v246
        %v256 = vpop.permute.xlu0 %255
        %259 = vset.pattern.permute.xlu0 0
        %260 = vperm.xlu0 %259, %v247
        %v261 = vpop.permute.xlu0 %260
        %vm263 = vcmask 261120
        %v265 = vsel %vm263, %v242, 0
        %v268 = vsel %vm263, %v243, 0
        %v271 = vsel %vm263, %v244, 0
        %v274 = vsel %vm263, %v226, 0
        %v277 = vsel %vm263, %v227, 0
        %v280 = vsel %vm263, %v228, 0
        %v283 = vsel %vm263, %v229, 0
        %v286 = vsel %vm263, %v230, 0
        %v289 = vsel %vm263, %v231, 0
        %v292 = vsel %vm263, %v232, 0
        %v295 = vsel %vm263, %v233, 0
        %v298 = vsel %vm263, %v234, 0
        %v301 = vsel %vm263, %v235, 0
        %v304 = vsel %vm263, %v236, 0
        %v307 = vsel %vm263, %v237, 0
        %v310 = vsel %vm263, %v238, 0
        %v313 = vsel %vm263, %v239, 0
        %v316 = vsel %vm263, %v240, 0
        %v319 = vsel %vm263, %v241, 0
        %321 = vmatprep.subr.mxu0 0.0
        %322 = vmatpush1.xpose.msra.mxu0 %v274
        %323 = vmatprep.subr.mxu0 0.0
        %324 = vmatpush1.xpose.msra.mxu0 %v277
        %325 = vmatprep.subr.mxu0 0.0
        %326 = vmatpush1.xpose.msra.mxu0 %v280
        %327 = vmatprep.subr.mxu0 0.0
        %328 = vmatpush1.xpose.msra.mxu0 %v283
        %329 = vmatprep.subr.mxu0 0.0
        %330 = vmatpush1.xpose.msra.mxu0 %v286
        %331 = vmatprep.subr.mxu0 0.0
        %332 = vmatpush1.xpose.msra.mxu0 %v289
        %333 = vmatprep.subr.mxu0 0.0
        %334 = vmatpush1.xpose.msra.mxu0 %v292
        %335 = vmatprep.subr.mxu0 0.0
        %336 = vmatpush1.xpose.msra.mxu0 %v295
        %337 = vmatprep.subr.mxu0 0.0
        %338 = vmatpush1.xpose.msra.mxu0 %v298
        %339 = vmatprep.subr.mxu0 0.0
        %340 = vmatpush1.xpose.msra.mxu0 %v301
        %341 = vmatprep.subr.mxu0 0.0
        %342 = vmatpush1.xpose.msra.mxu0 %v304
        %343 = vmatprep.subr.mxu0 0.0
        %344 = vmatpush1.xpose.msra.mxu0 %v307
        %345 = vmatprep.subr.mxu0 0.0
        %346 = vmatpush1.xpose.msra.mxu0 %v310
        %347 = vmatprep.subr.mxu0 0.0
        %348 = vmatpush1.xpose.msra.mxu0 %v313
        %349 = vmatprep.subr.mxu0 0.0
        %350 = vmatpush1.xpose.msra.mxu0 %v316
        %351 = vmatprep.subr.mxu0 0.0
        %352 = vmatpush1.xpose.msra.mxu0 %v319
        %353 = vmatprep.subr.mxu0 0.0
        %354 = vmatpush1.xpose.msra.mxu0 0.0
        %355 = vmatprep.subr.mxu0 0.0
        %356 = vmatpush1.xpose.msra.mxu0 0.0
        %357 = vmatprep.subr.mxu0 0.0
        %358 = vmatpush1.xpose.msra.mxu0 0.0
        %359 = vmatprep.subr.mxu0 0.0
        %360 = vmatpush1.xpose.msra.mxu0 0.0
        %361 = vmatprep.subr.mxu0 0.0
        %362 = vmatpush1.xpose.msra.mxu0 0.0
        %363 = vmatprep.subr.mxu0 0.0
        %364 = vmatpush1.xpose.msra.mxu0 0.0
        %365 = vmatprep.subr.mxu0 0.0
        %366 = vmatpush1.xpose.msra.mxu0 0.0
        %367 = vmatprep.subr.mxu0 0.0
        %368 = vmatpush1.xpose.msra.mxu0 0.0
        %369 = vmatprep.subr.mxu0 0.0
        %370 = vmatpush1.xpose.msra.mxu0 0.0
        %371 = vmatprep.subr.mxu0 0.0
        %372 = vmatpush1.xpose.msra.mxu0 0.0
        %373 = vmatprep.subr.mxu0 0.0
        %374 = vmatpush1.xpose.msra.mxu0 0.0
        %375 = vmatprep.subr.mxu0 0.0
        %376 = vmatpush1.xpose.msra.mxu0 0.0
        %377 = vmatprep.subr.mxu0 0.0
        %378 = vmatpush1.xpose.msra.mxu0 0.0
        %379 = vmatprep.subr.mxu0 0.0
        %380 = vmatpush1.xpose.msra.mxu0 0.0
        %381 = vmatprep.subr.mxu0 0.0
        %382 = vmatpush1.xpose.msra.mxu0 0.0
        %383 = vmatprep.subr.mxu0 0.0
        %384 = vmatpush1.xpose.msra.mxu0 0.0
        %385 = vmatprep.mubr.f32.mxu0 0.0
        %386 = vmatmul.mubr.f32.gmra.mrb[0].mxu0 %v265
        %v387 = vpop.f32.mrb[0].mxu0
        %v388 = vadd.f32 %v251, %v387
        %v389 = vpop.f32.mrb[0].mxu0
        %390 = vmatprep.mubr.f32.mxu0 0.0
        %391 = vmatmul.mubr.f32.gmra.mrb[0].mxu0 %v268
        %v392 = vpop.f32.mrb[0].mxu0
        %v393 = vadd.f32 %v256, %v392
        %v394 = vpop.f32.mrb[0].mxu0
        %395 = vmatprep.mubr.f32.mxu0 0.0
        %396 = vmatmul.mubr.f32.gmra.mrb[0].mxu0 %v271
        %v397 = vpop.f32.mrb[0].mxu0
        %v398 = vadd.f32 %v261, %v397
        %v399 = vpop.f32.mrb[0].mxu0
        %400 = vdwg.mxu0
        %vm401 = vcmp.gt.f32.partialorder %v388, 0.0
        %vm402 = vcmp.gt.f32.partialorder %v393, 0.0
        %vm403 = vcmp.gt.f32.partialorder %v398, 0.0
        %v404 = vmul.f32 %v388, 0.01
        %v405 = vmul.f32 %v393, 0.01
        %v406 = vmul.f32 %v398, 0.01
        %v407 = vsel %vm401, %v388, %v404
        %v408 = vsel %vm402, %v393, %v405
        %v409 = vsel %vm403, %v398, %v406
        %v410 = vld [vmem:[%s3] sm:$0x1]
        %v411 = vld [vmem:[#allocation2] sm:$0x1]
        %413 = vset.pattern.permute.xlu0 0
        %414 = vperm.xlu0 %413, %v411
        %v415 = vpop.permute.xlu0 %414
        %v417 = vlaneseq
        %v418 = vshrl.u32 %v417, 7
        %v419 = vsub.s32 0, %v418
        %v420 = vrot.slane %v415, %v419
        %vm421 = vcmask 162816
        %v423 = vsel %vm421, %v410, 0
        %vm425 = vcmask 1043456
        %v427 = vsel %vm425, %v409, 0
        %429 = vmatprep.subr.mxu0 0.0
        %430 = vmatpush1.msra.mxu0 %v407
        %431 = vmatprep.subr.mxu0 0.0
        %432 = vmatpush1.msra.mxu0 %v408
        %433 = vmatprep.subr.mxu0 0.0
        %434 = vmatpush1.msra.mxu0 %v427
        %435 = vmatprep.subr.mxu0 0.0
        %436 = vmatpush1.msra.mxu0 0.0
        %437 = vmatprep.subr.mxu0 0.0
        %438 = vmatpush1.msra.mxu0 0.0
        %439 = vmatprep.subr.mxu0 0.0
        %440 = vmatpush1.msra.mxu0 0.0
        %441 = vmatprep.subr.mxu0 0.0
        %442 = vmatpush1.msra.mxu0 0.0
        %443 = vmatprep.subr.mxu0 0.0
        %444 = vmatpush1.msra.mxu0 0.0
        %445 = vmatprep.subr.mxu0 0.0
        %446 = vmatpush1.msra.mxu0 0.0
        %447 = vmatprep.subr.mxu0 0.0
        %448 = vmatpush1.msra.mxu0 0.0
        %449 = vmatprep.subr.mxu0 0.0
        %450 = vmatpush1.msra.mxu0 0.0
        %451 = vmatprep.subr.mxu0 0.0
        %452 = vmatpush1.msra.mxu0 0.0
        %453 = vmatprep.subr.mxu0 0.0
        %454 = vmatpush1.msra.mxu0 0.0
        %455 = vmatprep.subr.mxu0 0.0
        %456 = vmatpush1.msra.mxu0 0.0
        %457 = vmatprep.subr.mxu0 0.0
        %458 = vmatpush1.msra.mxu0 0.0
        %459 = vmatprep.subr.mxu0 0.0
        %460 = vmatpush1.msra.mxu0 0.0
        %461 = vmatprep.subr.mxu0 0.0
        %462 = vmatpush1.msra.mxu0 0.0
        %463 = vmatprep.subr.mxu0 0.0
        %464 = vmatpush1.msra.mxu0 0.0
        %465 = vmatprep.subr.mxu0 0.0
        %466 = vmatpush1.msra.mxu0 0.0
        %467 = vmatprep.subr.mxu0 0.0
        %468 = vmatpush1.msra.mxu0 0.0
        %469 = vmatprep.subr.mxu0 0.0
        %470 = vmatpush1.msra.mxu0 0.0
        %471 = vmatprep.subr.mxu0 0.0
        %472 = vmatpush1.msra.mxu0 0.0
        %473 = vmatprep.subr.mxu0 0.0
        %474 = vmatpush1.msra.mxu0 0.0
        %475 = vmatprep.subr.mxu0 0.0
        %476 = vmatpush1.msra.mxu0 0.0
        %477 = vmatprep.subr.mxu0 0.0
        %478 = vmatpush1.msra.mxu0 0.0
        %479 = vmatprep.subr.mxu0 0.0
        %480 = vmatpush1.msra.mxu0 0.0
        %481 = vmatprep.subr.mxu0 0.0
        %482 = vmatpush1.msra.mxu0 0.0
        %483 = vmatprep.subr.mxu0 0.0
        %484 = vmatpush1.msra.mxu0 0.0
        %485 = vmatprep.subr.mxu0 0.0
        %486 = vmatpush1.msra.mxu0 0.0
        %487 = vmatprep.subr.mxu0 0.0
        %488 = vmatpush1.msra.mxu0 0.0
        %489 = vmatprep.subr.mxu0 0.0
        %490 = vmatpush1.msra.mxu0 0.0
        %491 = vmatprep.subr.mxu0 0.0
        %492 = vmatpush1.msra.mxu0 0.0
        %493 = vmatprep.mubr.f32.mxu0 0.0
        %494 = vmatmul.mubr.f32.gmra.mrb[0].mxu0 %v423
        %v495 = vpop.f32.mrb[0].mxu0
        %v496 = vadd.f32 %v420, %v495
        %v497 = vpop.f32.mrb[0].mxu0
        %498 = vdwg.mxu0
        %v499 = vmul.f32 %v496, 1.442695
        %v500 = vpow.pop %v499
        %501 = vst [vmem:[%s219] sm:$0x1] %v500
        %s502 = sand.u32 %s139, 1
        %s503 = scalar_lea.sflag [#allocation4], %s502
        %s504 = sand.u32 %s139, 1
        %s505 = scalar_lea.vmem [#allocation3], %s504
        // Predicated region
        $region41: #{tpu_custom_call.1} parent=39 // pred_check
          %p506 = pneg %p149
        $region42: #{tpu_custom_call.1} parent=39 // pred_check_branch
          %508 = sbr.rel (%p506) target = $region44
        $region43: #{tpu_custom_call.1} parent=39 // pred_region
          %s510 = ssub.s32 16, 16
          %511 = vsyncadd %s503, %s510
          %s512 = smul.addr %s21, 16
          %s513 = scalar_lea.hbm %s5, %s512
          %s515 = sshll.u32 %s505, 4
          %s516 = int_to_ptr.vmem [resolvable:$true] %s515
          %518 = dma.vmem_to_hbm [thread:$0]  %s516, 16, %s513, %s503
        $region44: #{tpu_custom_call.1} parent=39 // pred_fallthru
          _
      $region40: #{tpu_custom_call.1} parent=5 // pred_fallthru
        _
      %p519 = scmp.le.s32.totalorder 2, %s16
      // Predicated region
      $region45: #{tpu_custom_call.1} parent=5 // pred_check
        %p520 = pneg %p519
      $region46: #{tpu_custom_call.1} parent=5 // pred_check_branch
        %522 = sbr.rel (%p520) target = $region48
      $region47: #{tpu_custom_call.1} parent=5 // pred_region
        %s523 = ssub.s32 %s16, 2
        // Predicated region
        $region49: #{tpu_custom_call.1} parent=47 // pred_check
          %p524 = pneg %p155
        $region50: #{tpu_custom_call.1} parent=47 // pred_check_branch
          %526 = sbr.rel (%p524) target = $region52
        $region51: #{tpu_custom_call.1} parent=47 // pred_region
          %s527 = sand.u32 %s140, 1
          %s528 = scalar_lea.sflag [#allocation4], %s527
          %s529 = sand.u32 %s140, 1
          %s530 = scalar_lea.vmem [#allocation3], %s529
          %531 = dma.done %s528, 16
        $region52: #{tpu_custom_call.1} parent=47 // pred_fallthru
          _
      $region48: #{tpu_custom_call.1} parent=5 // pred_fallthru
        _
    $region6: #{tpu_custom_call.1} parent=1 // loop_footer
      %s20 = sadd.s32 1, %s16
    $region7: #{tpu_custom_call.1} parent=1 // loop_footer_branch
      %15 = sbr.rel target = $region3
    $region8: #{tpu_custom_call.1} parent=1 // loop_exit
      _
    %532 = vsyncpa [#allocation4], 1
    %s533 = scalar_lea.sflag [#allocation4], 1
    %534 = vsyncpa %s533, 1

</llo_original>
